<compile_context>
chip_gen: v7x
topology: tpu7x:2x2x1
jax: 0.10.0
libtpu: 0.0.40
codegen_flags: <defaults>
</compile_context>

<pallas_src>
import functools

import jax
import jax.numpy as jnp
from jax.experimental import pallas as pl
from jax.experimental.pallas import tpu as pltpu


def _dice_ce_kernel(logits_ref, tgt_ref, ce_out_ref, inter_out_ref):
    # logits_ref: (1, C, S, 128) f32  -- pixels on (sublane, lane), classes unrolled
    # tgt_ref   : (1, S, 128)    i32  -- class ids, -1 marks padding pixels
    # ce_out_ref / inter_out_ref: (1, 1, 1, 128) f32 per-tile lane partial sums
    num_classes = logits_ref.shape[1]
    tgt = tgt_ref[0]                                   # (S, 128) int32

    # running max over classes: C-1 elementwise vreg maxes (pure VPU)
    m = logits_ref[0, 0]
    for k in range(1, num_classes):
        m = jnp.maximum(m, logits_ref[0, k])

    # single unrolled pass over classes: exp-sum, target logit, target exp
    s = jnp.zeros_like(m)
    logit_t = jnp.zeros_like(m)
    e_t = jnp.zeros_like(m)
    for k in range(num_classes):
        xk = logits_ref[0, k]
        ek = jnp.exp(xk - m)                           # EUP
        s = s + ek
        is_k = tgt == k
        logit_t = logit_t + jnp.where(is_k, xk, 0.0)
        e_t = e_t + jnp.where(is_k, ek, 0.0)

    valid = tgt >= 0                                   # mask out padding pixels
    # -log softmax[target] = m + log(s) - logit[target]
    ce_vec = jnp.where(valid, m + jnp.log(s) - logit_t, 0.0)
    # softmax[target] = exp(logit[target] - m) / s  (reuses e_t, no extra exp)
    inter_vec = jnp.where(valid, e_t / s, 0.0)

    # one sublane reduce per quantity per tile -> (1, 128) lane partials
    ce_out_ref[...] = jnp.sum(ce_vec, axis=0, keepdims=True).reshape(ce_out_ref.shape)
    inter_out_ref[...] = jnp.sum(inter_vec, axis=0, keepdims=True).reshape(
        inter_out_ref.shape)


@functools.partial(jax.jit, static_argnames=("smooth",))
def dice_ce_loss(inputs, targets, *, smooth=1.0):
    """inputs: (N, C, H, W) f32 logits; targets: (N, H, W) int class ids."""
    n, c, h, w = inputs.shape
    hw = h * w
    m_pixels = n * hw
    lanes = 128

    # ---- pick a large lane-dense tile: s_tile sublane-rows of 128 pixels each ----
    rows_total = -(-hw // lanes)                                  # ceil(hw / 128)
    cap = max(8, min(1024, ((4096 // c) // 8) * 8))               # ~<=2 MiB logits/block
    s_tile = min(rows_total, cap)
    rows_padded = -(-rows_total // s_tile) * s_tile
    hw_padded = rows_padded * lanes
    num_tiles = rows_padded // s_tile

    # ---- no-copy relayout: native NCHW, pixels folded onto (sublane, lane) ----
    logits = inputs.astype(jnp.float32).reshape(n, c, hw)
    tgt = targets.astype(jnp.int32).reshape(n, hw)
    if hw_padded != hw:
        pad = hw_padded - hw
        logits = jnp.pad(logits, ((0, 0), (0, 0), (0, pad)))
        tgt = jnp.pad(tgt, ((0, 0), (0, pad)), constant_values=-1)
    logits = logits.reshape(n, c, rows_padded, lanes)
    tgt = tgt.reshape(n, rows_padded, lanes)

    ce_part, inter_part = pl.pallas_call(
        _dice_ce_kernel,
        out_shape=(
            jax.ShapeDtypeStruct((n, num_tiles, 1, lanes), jnp.float32),
            jax.ShapeDtypeStruct((n, num_tiles, 1, lanes), jnp.float32),
        ),
        grid_spec=pltpu.PrefetchScalarGridSpec(
            num_scalar_prefetch=0,
            grid=(n, num_tiles),
            in_specs=[
                pl.BlockSpec((1, c, s_tile, lanes), lambda i, j: (i, 0, j, 0)),
                pl.BlockSpec((1, s_tile, lanes), lambda i, j: (i, j, 0)),
            ],
            out_specs=[
                pl.BlockSpec((1, 1, 1, lanes), lambda i, j: (i, j, 0, 0)),
                pl.BlockSpec((1, 1, 1, lanes), lambda i, j: (i, j, 0, 0)),
            ],
        ),
        compiler_params=pltpu.CompilerParams(
            dimension_semantics=("parallel", "parallel")),
    )(logits, tgt)

    ce_sum = jnp.sum(ce_part)                 # tree reduce of per-tile lane partials
    intersection = jnp.sum(inter_part)
    m_f = jnp.float32(m_pixels)
    ce_mean = ce_sum / m_f
    # sum(softmax probs) == sum(one_hot) == number of pixels, analytically.
    dice = 1.0 - (2.0 * intersection + smooth) / (2.0 * m_f + smooth)
    return ce_mean + dice


def _reference(inputs, targets, smooth=1.0):
    # pure-JAX reference mirroring the PyTorch module
    n, c, h, w = inputs.shape
    logp = jax.nn.log_softmax(inputs, axis=1)                      # (N,C,H,W)
    one_hot = jax.nn.one_hot(targets, c, axis=1, dtype=jnp.float32)
    ce = -jnp.mean(jnp.sum(one_hot * logp, axis=1))
    p = jax.nn.softmax(inputs, axis=1)
    inter = jnp.sum(p * one_hot)
    dice = 1.0 - (2.0 * inter + smooth) / (jnp.sum(p) + jnp.sum(one_hot) + smooth)
    return ce + dice


if __name__ == "__main__":
    key = jax.random.PRNGKey(0)
    k1, k2 = jax.random.split(key)
    N, C, H, W = 2, 4, 16, 16
    inputs = jax.random.normal(k1, (N, C, H, W), dtype=jnp.float32)
    targets = jax.random.randint(k2, (N, H, W), 0, C, dtype=jnp.int32)

    loss = dice_ce_loss(inputs, targets)
    loss = jax.block_until_ready(loss)

    ref = _reference(inputs, targets)
    assert jnp.allclose(loss, ref, rtol=1e-5, atol=1e-5), (loss, ref)

    print("KERNEL_OK")
</pallas_src>

<mosaic_0001>
module attributes {stable_mosaic.version = 11 : i64} {
  func.func @_dice_ce_kernel(%arg0: i32, %arg1: i32, %arg2: memref<1x4x2x128xf32, #tpu.memory_space<vmem>>, %arg3: memref<1x2x128xi32, #tpu.memory_space<vmem>>, %arg4: memref<1x1x1x128xf32, #tpu.memory_space<vmem>>, %arg5: memref<1x1x1x128xf32, #tpu.memory_space<vmem>>) attributes {dimension_semantics = [#tpu.dimension_semantics<parallel>, #tpu.dimension_semantics<parallel>], iteration_bounds = array<i64: 2, 1>, scalar_prefetch = 0 : i64, scratch_operands = 0 : i64, tpu.core_type = #tpu.core_type<tc>, window_params = [{transform_indices = @transform_0, window_bounds = array<i64: 1, 4, 2, 128>}, {transform_indices = @transform_1, window_bounds = array<i64: 1, 2, 128>}, {transform_indices = @transform_2, window_bounds = array<i64: 1, 1, 1, 128>}, {transform_indices = @transform_3, window_bounds = array<i64: 1, 1, 1, 128>}]} {
    %c0 = arith.constant 0 : index
    %c0_0 = arith.constant 0 : index
    %c0_1 = arith.constant 0 : index
    %0 = vector.load %arg3[%c0, %c0_0, %c0_1] : memref<1x2x128xi32, #tpu.memory_space<vmem>>, vector<1x2x128xi32>
    %1 = vector.shape_cast %0 : vector<1x2x128xi32> to vector<2x128xi32>
    %c0_2 = arith.constant 0 : index
    %c0_3 = arith.constant 0 : index
    %c0_4 = arith.constant 0 : index
    %c0_5 = arith.constant 0 : index
    %2 = vector.load %arg2[%c0_2, %c0_3, %c0_4, %c0_5] : memref<1x4x2x128xf32, #tpu.memory_space<vmem>>, vector<1x1x2x128xf32>
    %3 = vector.shape_cast %2 : vector<1x1x2x128xf32> to vector<2x128xf32>
    %c0_6 = arith.constant 0 : index
    %c1 = arith.constant 1 : index
    %c0_7 = arith.constant 0 : index
    %c0_8 = arith.constant 0 : index
    %4 = vector.load %arg2[%c0_6, %c1, %c0_7, %c0_8] : memref<1x4x2x128xf32, #tpu.memory_space<vmem>>, vector<1x1x2x128xf32>
    %5 = vector.shape_cast %4 : vector<1x1x2x128xf32> to vector<2x128xf32>
    %6 = arith.maximumf %3, %5 : vector<2x128xf32>
    %c0_9 = arith.constant 0 : index
    %c2 = arith.constant 2 : index
    %c0_10 = arith.constant 0 : index
    %c0_11 = arith.constant 0 : index
    %7 = vector.load %arg2[%c0_9, %c2, %c0_10, %c0_11] : memref<1x4x2x128xf32, #tpu.memory_space<vmem>>, vector<1x1x2x128xf32>
    %8 = vector.shape_cast %7 : vector<1x1x2x128xf32> to vector<2x128xf32>
    %9 = arith.maximumf %6, %8 : vector<2x128xf32>
    %c0_12 = arith.constant 0 : index
    %c3 = arith.constant 3 : index
    %c0_13 = arith.constant 0 : index
    %c0_14 = arith.constant 0 : index
    %10 = vector.load %arg2[%c0_12, %c3, %c0_13, %c0_14] : memref<1x4x2x128xf32, #tpu.memory_space<vmem>>, vector<1x1x2x128xf32>
    %11 = vector.shape_cast %10 : vector<1x1x2x128xf32> to vector<2x128xf32>
    %12 = arith.maximumf %9, %11 : vector<2x128xf32>
    %cst = arith.constant 0.000000e+00 : f32
    %13 = vector.broadcast %cst : f32 to vector<2x128xf32>
    %cst_15 = arith.constant 0.000000e+00 : f32
    %14 = vector.broadcast %cst_15 : f32 to vector<2x128xf32>
    %cst_16 = arith.constant 0.000000e+00 : f32
    %15 = vector.broadcast %cst_16 : f32 to vector<2x128xf32>
    %c0_17 = arith.constant 0 : index
    %c0_18 = arith.constant 0 : index
    %c0_19 = arith.constant 0 : index
    %c0_20 = arith.constant 0 : index
    %16 = vector.load %arg2[%c0_17, %c0_18, %c0_19, %c0_20] : memref<1x4x2x128xf32, #tpu.memory_space<vmem>>, vector<1x1x2x128xf32>
    %17 = vector.shape_cast %16 : vector<1x1x2x128xf32> to vector<2x128xf32>
    %18 = arith.subf %17, %12 : vector<2x128xf32>
    %19 = math.exp %18 : vector<2x128xf32>
    %20 = arith.addf %13, %19 : vector<2x128xf32>
    %c0_i32 = arith.constant 0 : i32
    %21 = vector.broadcast %c0_i32 : i32 to vector<2x128xi32>
    %22 = arith.cmpi eq, %1, %21 : vector<2x128xi32>
    %cst_21 = arith.constant 0.000000e+00 : f32
    %23 = vector.broadcast %cst_21 : f32 to vector<2x128xf32>
    %24 = arith.select %22, %17, %23 : vector<2x128xi1>, vector<2x128xf32>
    %25 = arith.addf %14, %24 : vector<2x128xf32>
    %cst_22 = arith.constant 0.000000e+00 : f32
    %26 = vector.broadcast %cst_22 : f32 to vector<2x128xf32>
    %27 = arith.select %22, %19, %26 : vector<2x128xi1>, vector<2x128xf32>
    %28 = arith.addf %15, %27 : vector<2x128xf32>
    %c0_23 = arith.constant 0 : index
    %c1_24 = arith.constant 1 : index
    %c0_25 = arith.constant 0 : index
    %c0_26 = arith.constant 0 : index
    %29 = vector.load %arg2[%c0_23, %c1_24, %c0_25, %c0_26] : memref<1x4x2x128xf32, #tpu.memory_space<vmem>>, vector<1x1x2x128xf32>
    %30 = vector.shape_cast %29 : vector<1x1x2x128xf32> to vector<2x128xf32>
    %31 = arith.subf %30, %12 : vector<2x128xf32>
    %32 = math.exp %31 : vector<2x128xf32>
    %33 = arith.addf %20, %32 : vector<2x128xf32>
    %c1_i32 = arith.constant 1 : i32
    %34 = vector.broadcast %c1_i32 : i32 to vector<2x128xi32>
    %35 = arith.cmpi eq, %1, %34 : vector<2x128xi32>
    %cst_27 = arith.constant 0.000000e+00 : f32
    %36 = vector.broadcast %cst_27 : f32 to vector<2x128xf32>
    %37 = arith.select %35, %30, %36 : vector<2x128xi1>, vector<2x128xf32>
    %38 = arith.addf %25, %37 : vector<2x128xf32>
    %cst_28 = arith.constant 0.000000e+00 : f32
    %39 = vector.broadcast %cst_28 : f32 to vector<2x128xf32>
    %40 = arith.select %35, %32, %39 : vector<2x128xi1>, vector<2x128xf32>
    %41 = arith.addf %28, %40 : vector<2x128xf32>
    %c0_29 = arith.constant 0 : index
    %c2_30 = arith.constant 2 : index
    %c0_31 = arith.constant 0 : index
    %c0_32 = arith.constant 0 : index
    %42 = vector.load %arg2[%c0_29, %c2_30, %c0_31, %c0_32] : memref<1x4x2x128xf32, #tpu.memory_space<vmem>>, vector<1x1x2x128xf32>
    %43 = vector.shape_cast %42 : vector<1x1x2x128xf32> to vector<2x128xf32>
    %44 = arith.subf %43, %12 : vector<2x128xf32>
    %45 = math.exp %44 : vector<2x128xf32>
    %46 = arith.addf %33, %45 : vector<2x128xf32>
    %c2_i32 = arith.constant 2 : i32
    %47 = vector.broadcast %c2_i32 : i32 to vector<2x128xi32>
    %48 = arith.cmpi eq, %1, %47 : vector<2x128xi32>
    %cst_33 = arith.constant 0.000000e+00 : f32
    %49 = vector.broadcast %cst_33 : f32 to vector<2x128xf32>
    %50 = arith.select %48, %43, %49 : vector<2x128xi1>, vector<2x128xf32>
    %51 = arith.addf %38, %50 : vector<2x128xf32>
    %cst_34 = arith.constant 0.000000e+00 : f32
    %52 = vector.broadcast %cst_34 : f32 to vector<2x128xf32>
    %53 = arith.select %48, %45, %52 : vector<2x128xi1>, vector<2x128xf32>
    %54 = arith.addf %41, %53 : vector<2x128xf32>
    %c0_35 = arith.constant 0 : index
    %c3_36 = arith.constant 3 : index
    %c0_37 = arith.constant 0 : index
    %c0_38 = arith.constant 0 : index
    %55 = vector.load %arg2[%c0_35, %c3_36, %c0_37, %c0_38] : memref<1x4x2x128xf32, #tpu.memory_space<vmem>>, vector<1x1x2x128xf32>
    %56 = vector.shape_cast %55 : vector<1x1x2x128xf32> to vector<2x128xf32>
    %57 = arith.subf %56, %12 : vector<2x128xf32>
    %58 = math.exp %57 : vector<2x128xf32>
    %59 = arith.addf %46, %58 : vector<2x128xf32>
    %c3_i32 = arith.constant 3 : i32
    %60 = vector.broadcast %c3_i32 : i32 to vector<2x128xi32>
    %61 = arith.cmpi eq, %1, %60 : vector<2x128xi32>
    %cst_39 = arith.constant 0.000000e+00 : f32
    %62 = vector.broadcast %cst_39 : f32 to vector<2x128xf32>
    %63 = arith.select %61, %56, %62 : vector<2x128xi1>, vector<2x128xf32>
    %64 = arith.addf %51, %63 : vector<2x128xf32>
    %cst_40 = arith.constant 0.000000e+00 : f32
    %65 = vector.broadcast %cst_40 : f32 to vector<2x128xf32>
    %66 = arith.select %61, %58, %65 : vector<2x128xi1>, vector<2x128xf32>
    %67 = arith.addf %54, %66 : vector<2x128xf32>
    %c0_i32_41 = arith.constant 0 : i32
    %68 = vector.broadcast %c0_i32_41 : i32 to vector<2x128xi32>
    %69 = arith.cmpi sge, %1, %68 : vector<2x128xi32>
    %70 = math.log %59 : vector<2x128xf32>
    %71 = arith.addf %12, %70 : vector<2x128xf32>
    %72 = arith.subf %71, %64 : vector<2x128xf32>
    %cst_42 = arith.constant 0.000000e+00 : f32
    %73 = vector.broadcast %cst_42 : f32 to vector<2x128xf32>
    %74 = arith.select %69, %72, %73 : vector<2x128xi1>, vector<2x128xf32>
    %75 = arith.divf %67, %59 : vector<2x128xf32>
    %cst_43 = arith.constant 0.000000e+00 : f32
    %76 = vector.broadcast %cst_43 : f32 to vector<2x128xf32>
    %77 = arith.select %69, %75, %76 : vector<2x128xi1>, vector<2x128xf32>
    %cst_44 = arith.constant dense<0.000000e+00> : vector<128xf32>
    %78 = vector.multi_reduction <add>, %74, %cst_44 [0] : vector<2x128xf32> to vector<128xf32>
    %79 = vector.shape_cast %78 : vector<128xf32> to vector<1x128xf32>
    %80 = vector.shape_cast %79 : vector<1x128xf32> to vector<1x1x1x128xf32>
    %c0_45 = arith.constant 0 : index
    %c0_46 = arith.constant 0 : index
    %c0_47 = arith.constant 0 : index
    %c0_48 = arith.constant 0 : index
    %81 = vector.load %arg4[%c0_45, %c0_46, %c0_47, %c0_48] : memref<1x1x1x128xf32, #tpu.memory_space<vmem>>, vector<1x1x1x128xf32>
    tpu.vector_store %arg4[%c0_45, %c0_46, %c0_47, %c0_48], %80 {strides = array<i32>} : memref<1x1x1x128xf32, #tpu.memory_space<vmem>>, vector<1x1x1x128xf32>,
    %cst_49 = arith.constant dense<0.000000e+00> : vector<128xf32>
    %82 = vector.multi_reduction <add>, %77, %cst_49 [0] : vector<2x128xf32> to vector<128xf32>
    %83 = vector.shape_cast %82 : vector<128xf32> to vector<1x128xf32>
    %84 = vector.shape_cast %83 : vector<1x128xf32> to vector<1x1x1x128xf32>
    %c0_50 = arith.constant 0 : index
    %c0_51 = arith.constant 0 : index
    %c0_52 = arith.constant 0 : index
    %c0_53 = arith.constant 0 : index
    %85 = vector.load %arg5[%c0_50, %c0_51, %c0_52, %c0_53] : memref<1x1x1x128xf32, #tpu.memory_space<vmem>>, vector<1x1x1x128xf32>
    tpu.vector_store %arg5[%c0_50, %c0_51, %c0_52, %c0_53], %84 {strides = array<i32>} : memref<1x1x1x128xf32, #tpu.memory_space<vmem>>, vector<1x1x1x128xf32>,
    return
  }
  func.func @transform_0(%arg0: i32, %arg1: i32) -> (i32, i32, i32, i32) {
    %c0_i32 = arith.constant 0 : i32
    %c0_i32_0 = arith.constant 0 : i32
    %c0_i32_1 = arith.constant 0 : i32
    return %arg0, %c0_i32, %arg1, %c0_i32_0 : i32, i32, i32, i32
  }
  func.func @transform_1(%arg0: i32, %arg1: i32) -> (i32, i32, i32) {
    %c0_i32 = arith.constant 0 : i32
    %c0_i32_0 = arith.constant 0 : i32
    return %arg0, %arg1, %c0_i32 : i32, i32, i32
  }
  func.func @transform_2(%arg0: i32, %arg1: i32) -> (i32, i32, i32, i32) {
    %c0_i32 = arith.constant 0 : i32
    %c0_i32_0 = arith.constant 0 : i32
    %c0_i32_1 = arith.constant 0 : i32
    return %arg0, %arg1, %c0_i32, %c0_i32_0 : i32, i32, i32, i32
  }
  func.func @transform_3(%arg0: i32, %arg1: i32) -> (i32, i32, i32, i32) {
    %c0_i32 = arith.constant 0 : i32
    %c0_i32_0 = arith.constant 0 : i32
    %c0_i32_1 = arith.constant 0 : i32
    return %arg0, %arg1, %c0_i32, %c0_i32_0 : i32, i32, i32, i32
  }
}

</mosaic_0001>

<llo_original>
// kernel: dice_ce_loss.1
$region0: #{dice_ce_loss.1}
  #allocation0 [shape = 'u32[]', space=smem, size = 0x4, offset = 0x4, fixed_abs, tag = 'smem constant byte address 0x4 - core index']
  #allocation1 [shape = 'u32[144,128]{1,0:T(1,128)}', space=vmem, size = 0x12000, scoped, tag = 'internal scratch']
  %s0 = inlined_call_operand.vmem [shape: f32[2,4,2,128], index: 0, kind: input, shape index: {}]
  %s1 = inlined_call_operand.vmem [shape: s32[2,2,128], index: 1, kind: input, shape index: {}]
  %s2 = inlined_call_operand.vmem [shape: f32[2,1,1,128], index: 2, kind: output, shape index: {0}]
  %s3 = inlined_call_operand.vmem [shape: f32[2,1,1,128], index: 3, kind: output, shape index: {1}]
  %4 = xla_tuple %s2, %s3
  %s5 = sld [smem:[#allocation0]]
  $region49: #{dice_ce_loss.1} parent=0
    _
  %s7 = ssub.s32 1, %s5
  %s8 = scalar_select 0, %s7, %s5
  loop: start=0, step=1, limit=4
  $region2: #{dice_ce_loss.1} parent=0 // loop_pre_header
    _
  $region3: #{dice_ce_loss.1} parent=0 // loop_header
    %s10 = sphi 0, %s14
    %p11 = scmp.ge.s32.totalorder %s10, 4
    %s17 = sphi 0, %s29
    %s18 = sphi 0, %s25
    %s19 = sphi 0, %s17
    %s20 = sphi 0, %s18
    %s21 = sphi 0, %s19
    %s22 = sphi 0, %s20
    %s34 = sphi 0, %s36
    %s37 = sphi 0, %s34
    %s38 = sphi 0, %s37
    %s54 = sphi 0, %s38
    %s62 = sphi 0, %s64
    %s65 = sphi 0, %s62
    %s66 = sphi 0, %s65
    %s82 = sphi 0, %s66
    %s90 = sphi 0, %s92
    %s93 = sphi 0, %s90
    %s94 = sphi 0, %s93
    %s110 = sphi 0, %s94
    %s118 = sphi 0, %s120
    %s121 = sphi 0, %s118
    %s122 = sphi 0, %s121
    %s138 = sphi 0, %s122
  $region4: #{dice_ce_loss.1} parent=0 // loop_header_branch
    %13 = sbr.rel (%p11) target = $region8
  $region5: #{dice_ce_loss.1} parent=0 // loop_body
    %s15 = ssub.s32 %s10, 1
    %s16 = ssub.s32 %s10, 2
    %s23 = sadd.s32 1, %s18
    %p24 = scmp.ge.s32.totalorder %s23, 1
    %s25 = scalar_select %p24, 0, %s23
    %s26 = sadd.s32 1, %s17
    %s27 = scalar_select %p24, %s26, %s17
    %p28 = scmp.ge.s32.totalorder %s27, 2
    %s29 = scalar_select %p28, 0, %s27
    %s30 = ssub.s32 %s17, %s29
    %s31 = ssub.s32 %s18, %s25
    %s32 = sor.u32 %s30, %s31
    %p33 = scmp.eq.s32.totalorder %s32, 0
    %s35 = sadd.s32 %s34, 1
    %s36 = scalar_select %p33, %s34, %s35
    %p39 = pneg %p33
    %p40 = scmp.eq.s32.totalorder %s10, 1
    %p41 = por %p39, %p40
    %p42 = scmp.ne.s32.totalorder %s34, %s37
    %p43 = scmp.eq.s32.totalorder %s10, 0
    %p44 = por %p42, %p43
    %p45 = scmp.ne.s32.totalorder %s34, %s37
    %p46 = scmp.eq.s32.totalorder %s15, 1
    %p47 = por %p45, %p46
    %p48 = scmp.ne.s32.totalorder %s37, %s38
    %p49 = scmp.eq.s32.totalorder %s15, 0
    %p50 = por %p48, %p49
    %p51 = scmp.ne.s32.totalorder %s37, %s38
    %p52 = scmp.eq.s32.totalorder %s16, 1
    %p53 = por %p51, %p52
    %p55 = scmp.ne.s32.totalorder %s38, %s54
    %p56 = scmp.eq.s32.totalorder %s16, 0
    %p57 = por %p55, %p56
    %s58 = ssub.s32 %s17, %s29
    %s59 = ssub.s32 %s18, %s25
    %s60 = sor.u32 %s58, %s59
    %p61 = scmp.eq.s32.totalorder %s60, 0
    %s63 = sadd.s32 %s62, 1
    %s64 = scalar_select %p61, %s62, %s63
    %p67 = pneg %p61
    %p68 = scmp.eq.s32.totalorder %s10, 1
    %p69 = por %p67, %p68
    %p70 = scmp.ne.s32.totalorder %s62, %s65
    %p71 = scmp.eq.s32.totalorder %s10, 0
    %p72 = por %p70, %p71
    %p73 = scmp.ne.s32.totalorder %s62, %s65
    %p74 = scmp.eq.s32.totalorder %s15, 1
    %p75 = por %p73, %p74
    %p76 = scmp.ne.s32.totalorder %s65, %s66
    %p77 = scmp.eq.s32.totalorder %s15, 0
    %p78 = por %p76, %p77
    %p79 = scmp.ne.s32.totalorder %s65, %s66
    %p80 = scmp.eq.s32.totalorder %s16, 1
    %p81 = por %p79, %p80
    %p83 = scmp.ne.s32.totalorder %s66, %s82
    %p84 = scmp.eq.s32.totalorder %s16, 0
    %p85 = por %p83, %p84
    %s86 = ssub.s32 %s17, %s29
    %s87 = ssub.s32 %s18, %s25
    %s88 = sor.u32 %s86, %s87
    %p89 = scmp.eq.s32.totalorder %s88, 0
    %s91 = sadd.s32 %s90, 1
    %s92 = scalar_select %p89, %s90, %s91
    %p95 = pneg %p89
    %p96 = scmp.eq.s32.totalorder %s10, 1
    %p97 = por %p95, %p96
    %p98 = scmp.ne.s32.totalorder %s90, %s93
    %p99 = scmp.eq.s32.totalorder %s10, 0
    %p100 = por %p98, %p99
    %p101 = scmp.ne.s32.totalorder %s90, %s93
    %p102 = scmp.eq.s32.totalorder %s15, 1
    %p103 = por %p101, %p102
    %p104 = scmp.ne.s32.totalorder %s93, %s94
    %p105 = scmp.eq.s32.totalorder %s15, 0
    %p106 = por %p104, %p105
    %p107 = scmp.ne.s32.totalorder %s93, %s94
    %p108 = scmp.eq.s32.totalorder %s16, 1
    %p109 = por %p107, %p108
    %p111 = scmp.ne.s32.totalorder %s94, %s110
    %p112 = scmp.eq.s32.totalorder %s16, 0
    %p113 = por %p111, %p112
    %s114 = ssub.s32 %s17, %s29
    %s115 = ssub.s32 %s18, %s25
    %s116 = sor.u32 %s114, %s115
    %p117 = scmp.eq.s32.totalorder %s116, 0
    %s119 = sadd.s32 %s118, 1
    %s120 = scalar_select %p117, %s118, %s119
    %p123 = pneg %p117
    %p124 = scmp.eq.s32.totalorder %s10, 1
    %p125 = por %p123, %p124
    %p126 = scmp.ne.s32.totalorder %s118, %s121
    %p127 = scmp.eq.s32.totalorder %s10, 0
    %p128 = por %p126, %p127
    %p129 = scmp.ne.s32.totalorder %s118, %s121
    %p130 = scmp.eq.s32.totalorder %s15, 1
    %p131 = por %p129, %p130
    %p132 = scmp.ne.s32.totalorder %s121, %s122
    %p133 = scmp.eq.s32.totalorder %s15, 0
    %p134 = por %p132, %p133
    %p135 = scmp.ne.s32.totalorder %s121, %s122
    %p136 = scmp.eq.s32.totalorder %s16, 1
    %p137 = por %p135, %p136
    %p139 = scmp.ne.s32.totalorder %s122, %s138
    %p140 = scmp.eq.s32.totalorder %s16, 0
    %p141 = por %p139, %p140
    %p142 = scmp.le.s32.totalorder 1, %s10
    %p143 = scmp.lt.s32.totalorder %s10, 3
    %p144 = pnand %p142, %p143
    %p145 = pneg %p144
    // Predicated region
    $region9: #{dice_ce_loss.1} parent=5 // pred_check
      _
    $region10: #{dice_ce_loss.1} parent=5 // pred_check_branch
      %147 = sbr.rel (%p144) target = $region12
    $region11: #{dice_ce_loss.1} parent=5 // pred_region
      %s148 = ssub.s32 %s10, 1
    $region12: #{dice_ce_loss.1} parent=5 // pred_fallthru
      _
    %p149 = scmp.lt.s32.totalorder %s10, 2
    // Predicated region
    $region13: #{dice_ce_loss.1} parent=5 // pred_check
      %p150 = pneg %p149
    $region14: #{dice_ce_loss.1} parent=5 // pred_check_branch
      %152 = sbr.rel (%p150) target = $region16
    $region15: #{dice_ce_loss.1} parent=5 // pred_region
      // Predicated region
      $region17: #{dice_ce_loss.1} parent=15 // pred_check
        %p153 = pneg %p44
      $region18: #{dice_ce_loss.1} parent=15 // pred_check_branch
        %155 = sbr.rel (%p153) target = $region20
      $region19: #{dice_ce_loss.1} parent=15 // pred_region
        %p156 = scmp.lt.s32.totalorder %s17, 1
        %s157 = scalar_select %p156, %s17, 1
        %p158 = scmp.lt.s32.totalorder %s18, 0
        %s159 = scalar_select %p158, %s18, 0
        %s160 = smul.addr %s157, 4
        %s161 = sadd.s32 %s159, %s160
        %s162 = smul.addr %s161, 2
        %s163 = scalar_lea.vmem %s0, %s162
      $region20: #{dice_ce_loss.1} parent=15 // pred_fallthru
        _
      // Predicated region
      $region21: #{dice_ce_loss.1} parent=15 // pred_check
        %p164 = pneg %p72
      $region22: #{dice_ce_loss.1} parent=15 // pred_check_branch
        %166 = sbr.rel (%p164) target = $region24
      $region23: #{dice_ce_loss.1} parent=15 // pred_region
        %p167 = scmp.lt.s32.totalorder %s17, 1
        %s168 = scalar_select %p167, %s17, 1
        %p169 = scmp.lt.s32.totalorder %s18, 0
        %s170 = scalar_select %p169, %s18, 0
        %s171 = sadd.s32 %s170, %s168
        %s172 = smul.addr %s171, 2
        %s173 = scalar_lea.vmem %s1, %s172
      $region24: #{dice_ce_loss.1} parent=15 // pred_fallthru
        _
    $region16: #{dice_ce_loss.1} parent=5 // pred_fallthru
      _
    %p174 = scmp.le.s32.totalorder 1, %s10
    %p175 = scmp.lt.s32.totalorder %s10, 3
    %p176 = pnand %p174, %p175
    %p177 = pneg %p176
    // Predicated region
    $region25: #{dice_ce_loss.1} parent=5 // pred_check
      _
    $region26: #{dice_ce_loss.1} parent=5 // pred_check_branch
      %179 = sbr.rel (%p176) target = $region28
    $region27: #{dice_ce_loss.1} parent=5 // pred_region
      %s180 = ssub.s32 %s10, 1
      %p181 = scmp.lt.s32.totalorder %s19, 1
      %s182 = scalar_select %p181, %s19, 1
      %p183 = scmp.lt.s32.totalorder %s20, 0
      %s184 = scalar_select %p183, %s20, 0
      %s185 = smul.addr %s182, 4
      %s186 = sadd.s32 %s184, %s185
      %s187 = smul.addr %s186, 2
      %s188 = scalar_lea.vmem %s0, %s187
      %p189 = pneg %p50
      %p190 = pneg %p47
      %p191 = scmp.lt.s32.totalorder %s19, 1
      %s192 = scalar_select %p191, %s19, 1
      %p193 = scmp.lt.s32.totalorder %s20, 0
      %s194 = scalar_select %p193, %s20, 0
      %s195 = sadd.s32 %s194, %s192
      %s196 = smul.addr %s195, 2
      %s197 = scalar_lea.vmem %s1, %s196
      %p198 = pneg %p78
      %p199 = pneg %p75
      %p200 = pneg %p106
      %p201 = pneg %p103
      %p202 = scmp.lt.s32.totalorder %s19, 1
      %s203 = scalar_select %p202, %s19, 1
      %p204 = scmp.lt.s32.totalorder %s20, 0
      %s205 = scalar_select %p204, %s20, 0
      %s206 = sadd.s32 %s205, %s203
      %s207 = scalar_lea.vmem %s2, %s206
      %p208 = pneg %p134
      %p209 = pneg %p131
      %p210 = scmp.lt.s32.totalorder %s19, 1
      %s211 = scalar_select %p210, %s19, 1
      %p212 = scmp.lt.s32.totalorder %s20, 0
      %s213 = scalar_select %p212, %s20, 0
      %s214 = sadd.s32 %s213, %s211
      %s215 = scalar_lea.vmem %s3, %s214
      %p216 = scmp.lt.s32.totalorder %s19, 1
      %s217 = scalar_select %p216, %s19, 1
      %p218 = scmp.lt.s32.totalorder %s20, 0
      %s219 = scalar_select %p218, %s20, 0
      %s220 = smul.addr %s217, 4
      %s221 = sadd.s32 %s219, %s220
      %s222 = smul.addr %s221, 2
      %s223 = scalar_lea.vmem %s0, %s222
      %p224 = scmp.lt.s32.totalorder %s19, 1
      %s225 = scalar_select %p224, %s19, 1
      %p226 = scmp.lt.s32.totalorder %s20, 0
      %s227 = scalar_select %p226, %s20, 0
      %s228 = sadd.s32 %s227, %s225
      %s229 = smul.addr %s228, 2
      %s230 = scalar_lea.vmem %s1, %s229
      %p231 = scmp.lt.s32.totalorder %s19, 1
      %s232 = scalar_select %p231, %s19, 1
      %p233 = scmp.lt.s32.totalorder %s20, 0
      %s234 = scalar_select %p233, %s20, 0
      %s235 = sadd.s32 %s234, %s232
      %s236 = scalar_lea.vmem %s2, %s235
      %p237 = scmp.lt.s32.totalorder %s19, 1
      %s238 = scalar_select %p237, %s19, 1
      %p239 = scmp.lt.s32.totalorder %s20, 0
      %s240 = scalar_select %p239, %s20, 0
      %s241 = sadd.s32 %s240, %s238
      %s242 = scalar_lea.vmem %s3, %s241
      %v243 = vld [vmem:[%s230] sm:$0x3]
      %v244 = vld [vmem:[%s223] sm:$0x3]
      %s245 = scalar_lea.vmem %s223, 2
      %v246 = vld [vmem:[%s245] sm:$0x3]
      %v247 = vmax.f32 %v244, %v246
      %s248 = scalar_lea.vmem %s223, 4
      %v249 = vld [vmem:[%s248] sm:$0x3]
      %v250 = vmax.f32 %v247, %v249
      %s251 = scalar_lea.vmem %s223, 6
      %v252 = vld [vmem:[%s251] sm:$0x3]
      %v253 = vmax.f32 %v250, %v252
      %v254 = vsub.f32 %v244, %v253
      %v255 = vmul.f32 %v254, 1.442695
      %v256 = vpow.pop %v255
      %v257 = vadd.f32 %v256, 0.0
      %vm258 = vcmp.eq.s32.totalorder %v243, 0
      %v259 = vsel %vm258, %v244, 0.0
      %v260 = vadd.f32 %v259, 0.0
      %v261 = vsel %vm258, %v256, 0.0
      %v262 = vadd.f32 %v261, 0.0
      %v263 = vsub.f32 %v246, %v253
      %v264 = vmul.f32 %v263, 1.442695
      %v265 = vpow.pop %v264
      %v266 = vadd.f32 %v257, %v265
      %vm267 = vcmp.eq.s32.totalorder %v243, 1
      %v268 = vsel %vm267, %v246, 0.0
      %v269 = vadd.f32 %v260, %v268
      %v270 = vsel %vm267, %v265, 0.0
      %v271 = vadd.f32 %v262, %v270
      %v272 = vsub.f32 %v249, %v253
      %v273 = vmul.f32 %v272, 1.442695
      %v274 = vpow.pop %v273
      %v275 = vadd.f32 %v266, %v274
      %vm276 = vcmp.eq.s32.totalorder %v243, 2
      %v277 = vsel %vm276, %v249, 0.0
      %v278 = vadd.f32 %v269, %v277
      %v279 = vsel %vm276, %v274, 0.0
      %v280 = vadd.f32 %v271, %v279
      %v281 = vsub.f32 %v252, %v253
      %v282 = vmul.f32 %v281, 1.442695
      %v283 = vpow.pop %v282
      %v284 = vadd.f32 %v275, %v283
      %vm285 = vcmp.eq.s32.totalorder %v243, 3
      %v286 = vsel %vm285, %v252, 0.0
      %v287 = vadd.f32 %v278, %v286
      %v288 = vsel %vm285, %v283, 0.0
      %v289 = vadd.f32 %v280, %v288
      %vm290 = vcmp.ge.s32.totalorder %v243, 0
      %v291 = vlog2.pop %v284
      %v292 = vmul.f32 %v291, 0.6931472
      %v293 = vadd.f32 %v253, %v292
      %v294 = vsub.f32 %v293, %v287
      %v295 = vsel %vm290, %v294, 0.0
      %v296 = vrcp.pop %v284
      %v297 = vmul.f32 %v289, %v296
      %v298 = vsel %vm290, %v297, 0.0
      %vm299 = vcmask 1041408
      %v300 = vsel %vm299, %v295, 0.0
      %v301 = vrot.slane %v300, 4
      %v302 = vadd.f32 %v300, %v301
      %v303 = vrot.slane %v302, 2
      %v304 = vadd.f32 %v302, %v303
      %v305 = vrot.slane %v304, 1
      %v306 = vadd.f32 %v304, %v305
      %307 = vst [vmem:[%s236] sm:$0x1] %v306
      %v308 = vsel %vm299, %v298, 0.0
      %v309 = vrot.slane %v308, 4
      %v310 = vadd.f32 %v308, %v309
      %v311 = vrot.slane %v310, 2
      %v312 = vadd.f32 %v310, %v311
      %v313 = vrot.slane %v312, 1
      %v314 = vadd.f32 %v312, %v313
      %315 = vst [vmem:[%s242] sm:$0x1] %v314
      %p316 = scmp.lt.s32.totalorder %s19, 1
      %s317 = scalar_select %p316, %s19, 1
      %p318 = scmp.lt.s32.totalorder %s20, 0
      %s319 = scalar_select %p318, %s20, 0
      %s320 = sadd.s32 %s319, %s317
      %s321 = scalar_lea.vmem %s2, %s320
      %p322 = scmp.lt.s32.totalorder %s19, 1
      %s323 = scalar_select %p322, %s19, 1
      %p324 = scmp.lt.s32.totalorder %s20, 0
      %s325 = scalar_select %p324, %s20, 0
      %s326 = sadd.s32 %s325, %s323
      %s327 = scalar_lea.vmem %s3, %s326
      // Predicated region
      $region29: #{dice_ce_loss.1} parent=27 // pred_check
        %p328 = pneg %p103
      $region30: #{dice_ce_loss.1} parent=27 // pred_check_branch
        %330 = sbr.rel (%p328) target = $region32
      $region31: #{dice_ce_loss.1} parent=27 // pred_region
        _
      $region32: #{dice_ce_loss.1} parent=27 // pred_fallthru
        _
      // Predicated region
      $region33: #{dice_ce_loss.1} parent=27 // pred_check
        %p331 = pneg %p131
      $region34: #{dice_ce_loss.1} parent=27 // pred_check_branch
        %333 = sbr.rel (%p331) target = $region36
      $region35: #{dice_ce_loss.1} parent=27 // pred_region
        _
      $region36: #{dice_ce_loss.1} parent=27 // pred_fallthru
        _
    $region28: #{dice_ce_loss.1} parent=5 // pred_fallthru
      _
    %p334 = scmp.le.s32.totalorder 2, %s10
    // Predicated region
    $region37: #{dice_ce_loss.1} parent=5 // pred_check
      %p335 = pneg %p334
    $region38: #{dice_ce_loss.1} parent=5 // pred_check_branch
      %337 = sbr.rel (%p335) target = $region40
    $region39: #{dice_ce_loss.1} parent=5 // pred_region
      %s338 = ssub.s32 %s10, 2
      // Predicated region
      $region41: #{dice_ce_loss.1} parent=39 // pred_check
        %p339 = pneg %p109
      $region42: #{dice_ce_loss.1} parent=39 // pred_check_branch
        %341 = sbr.rel (%p339) target = $region44
      $region43: #{dice_ce_loss.1} parent=39 // pred_region
        %p342 = scmp.lt.s32.totalorder %s21, 1
        %s343 = scalar_select %p342, %s21, 1
        %p344 = scmp.lt.s32.totalorder %s22, 0
        %s345 = scalar_select %p344, %s22, 0
        %s346 = sadd.s32 %s345, %s343
        %s347 = scalar_lea.vmem %s2, %s346
      $region44: #{dice_ce_loss.1} parent=39 // pred_fallthru
        _
      // Predicated region
      $region45: #{dice_ce_loss.1} parent=39 // pred_check
        %p348 = pneg %p137
      $region46: #{dice_ce_loss.1} parent=39 // pred_check_branch
        %350 = sbr.rel (%p348) target = $region48
      $region47: #{dice_ce_loss.1} parent=39 // pred_region
        %p351 = scmp.lt.s32.totalorder %s21, 1
        %s352 = scalar_select %p351, %s21, 1
        %p353 = scmp.lt.s32.totalorder %s22, 0
        %s354 = scalar_select %p353, %s22, 0
        %s355 = sadd.s32 %s354, %s352
        %s356 = scalar_lea.vmem %s3, %s355
      $region48: #{dice_ce_loss.1} parent=39 // pred_fallthru
        _
    $region40: #{dice_ce_loss.1} parent=5 // pred_fallthru
      _
  $region6: #{dice_ce_loss.1} parent=0 // loop_footer
    %s14 = sadd.s32 1, %s10
  $region7: #{dice_ce_loss.1} parent=0 // loop_footer_branch
    %9 = sbr.rel target = $region3
  $region8: #{dice_ce_loss.1} parent=0 // loop_exit
    _

</llo_original>
